<compile_context>
chip_gen: v7x
topology: tpu7x:2x2x1
jax: 0.10.0
libtpu: 0.0.40
codegen_flags: <defaults>
</compile_context>

<pallas_src>
import functools

import jax
import jax.numpy as jnp
from jax import lax
from jax.experimental import pallas as pl
from jax.experimental.pallas import tpu as pltpu


def _round_up(x, m):
    return (x + m - 1) // m * m


# ------------------------------ Pallas kernel -------------------------------


def _conv_pool_head_kernel(p_ref, wc_ref, bc_ref, wh_ref, bh_ref,
                           o_ref, acc_ref, *, s_valid, tm):
    """One grid step: conv-matmul a (tm, Kpad) patch tile of one batch element,
    add bias + ReLU, accumulate the (row-masked) channel sum into a VMEM
    accumulator; on the last tile apply the global average pool and the
    400-dim head."""
    m = pl.program_id(1)
    nm = pl.num_programs(1)

    @pl.when(m == 0)
    def _init():
        acc_ref[...] = jnp.zeros_like(acc_ref)

    # Conv stem as matmul on the MXU: bf16 x bf16 -> f32 accumulate.
    acts = jnp.dot(p_ref[0], wc_ref[...], preferred_element_type=jnp.float32)
    acts = jnp.maximum(acts + bc_ref[...], 0.0)                     # [tm, Cpad]

    # Mask patch rows past the true (unpadded) number of conv output positions.
    row = m * tm + lax.broadcasted_iota(jnp.int32, (tm, 1), 0)
    acts = jnp.where(row < s_valid, acts, 0.0)

    # Global-average-pool numerator, accumulated in VMEM (no HBM round trip).
    acc_ref[...] += jnp.sum(acts, axis=0, keepdims=True)            # [1, Cpad]

    @pl.when(m == nm - 1)
    def _finalize():
        pooled = (acc_ref[...] * (1.0 / s_valid)).astype(jnp.bfloat16)   # [1, Cpad]
        feats = jnp.dot(pooled, wh_ref[...], preferred_element_type=jnp.float32)
        o_ref[0] = (feats + bh_ref[...]).astype(o_ref.dtype)             # [1, Fpad]


def conv_pool_head(patches_pad, wc, bc, wh, bh, *, s_valid, tm):
    """patches_pad: [B, S_pad, Kpad] bf16; wc: [Kpad, Cpad] bf16; bc: [1, Cpad] f32;
    wh: [Cpad, Fpad] bf16; bh: [1, Fpad] f32  ->  features [B, Fpad] f32."""
    B, S_pad, Kpad = patches_pad.shape
    Cpad = wc.shape[1]
    Fpad = wh.shape[1]
    assert S_pad % tm == 0
    nm = S_pad // tm

    kernel = functools.partial(_conv_pool_head_kernel, s_valid=s_valid, tm=tm)

    cost = pl.CostEstimate(
        flops=2 * B * S_pad * Kpad * Cpad + 2 * B * Cpad * Fpad,
        transcendentals=0,
        bytes_accessed=(patches_pad.size * 2 + wc.size * 2 + bc.size * 4
                        + wh.size * 2 + bh.size * 4 + B * Fpad * 4),
    )

    out = pl.pallas_call(
        kernel,
        out_shape=jax.ShapeDtypeStruct((B, 1, Fpad), jnp.float32),
        grid_spec=pltpu.PrefetchScalarGridSpec(
            num_scalar_prefetch=0,
            grid=(B, nm),
            in_specs=[
                pl.BlockSpec((1, tm, Kpad), lambda b, m: (b, m, 0)),   # patch tile
                pl.BlockSpec((Kpad, Cpad), lambda b, m: (0, 0)),       # conv weight (resident)
                pl.BlockSpec((1, Cpad), lambda b, m: (0, 0)),          # conv bias
                pl.BlockSpec((Cpad, Fpad), lambda b, m: (0, 0)),       # head weight (resident)
                pl.BlockSpec((1, Fpad), lambda b, m: (0, 0)),          # head bias
            ],
            out_specs=pl.BlockSpec((1, 1, Fpad), lambda b, m: (b, 0, 0)),
            scratch_shapes=[pltpu.VMEM((1, Cpad), jnp.float32)],
        ),
        compiler_params=pltpu.CompilerParams(
            dimension_semantics=("parallel", "arbitrary"),
            vmem_limit_bytes=32 * 1024 * 1024,
        ),
        cost_estimate=cost,
    )(patches_pad, wc, bc, wh, bh)
    return out[:, 0, :]                                               # [B, Fpad]


# ------------------------------ plain-JAX glue -------------------------------


def _im2col_channels_last(x, kernel, stride):
    """x: [B, C, T, H, W] -> patches [B, S, kt*kh*kw*C] (valid conv, channels-last
    inner ordering so the gather is lane-contiguous)."""
    B, C, T, H, W = x.shape
    kt, kh, kw = kernel
    st, sh, sw = stride
    To = (T - kt) // st + 1
    Ho = (H - kh) // sh + 1
    Wo = (W - kw) // sw + 1
    xcl = jnp.transpose(x, (0, 2, 3, 4, 1))                      # [B, T, H, W, C]
    taps = []
    for dt in range(kt):
        for dh in range(kh):
            for dw in range(kw):
                taps.append(xcl[:, dt: dt + st * To: st,
                                   dh: dh + sh * Ho: sh,
                                   dw: dw + sw * Wo: sw, :])     # [B, To, Ho, Wo, C]
    cols = jnp.stack(taps, axis=4)                               # [B, To, Ho, Wo, kk, C]
    patches = cols.reshape(B, To * Ho * Wo, kt * kh * kw * C)
    return patches, (To, Ho, Wo)


class VideoDetectorPallas:
    """Synthetic I3D-style detector: conv3d stem -> ReLU -> global avg pool -> fc(400)."""

    FEATURE_DIM = 400   # FVD feature dimension of the real I3D detector
    LANE = 128

    def __init__(self, in_channels=3, hidden=32, kernel=(3, 3, 3),
                 stride=(2, 2, 2), tile_m=512, seed=0):
        self.kernel = kernel
        self.stride = stride
        self.hidden = hidden
        self.tile_m = tile_m
        kt, kh, kw = kernel
        K = kt * kh * kw * in_channels
        self.K = K
        self.Kpad = _round_up(K, self.LANE)
        self.Cpad = _round_up(hidden, self.LANE)
        self.Fpad = _round_up(self.FEATURE_DIM, self.LANE)

        key = jax.random.PRNGKey(seed)
        k1, k2, k3, k4 = jax.random.split(key, 4)
        # conv3d weight in PyTorch layout [Cout, Cin, kt, kh, kw], flattened to
        # [K, Cout] with the same (tap-major, channel-minor) order as im2col.
        w_conv = jax.random.normal(k1, (hidden, in_channels, kt, kh, kw), jnp.float32) * 0.05
        wc = jnp.transpose(w_conv, (2, 3, 4, 1, 0)).reshape(K, hidden)
        b_conv = jax.random.normal(k2, (hidden,), jnp.float32) * 0.05
        w_head = jax.random.normal(k3, (hidden, self.FEATURE_DIM), jnp.float32) * 0.05
        b_head = jax.random.normal(k4, (self.FEATURE_DIM,), jnp.float32) * 0.05

        # Zero-pad to lane-dense shapes; padded channels stay exactly zero.
        self.wc_pad = jnp.pad(wc, ((0, self.Kpad - K), (0, self.Cpad - hidden))
                              ).astype(jnp.bfloat16)                       # [Kpad, Cpad]
        self.bc_pad = jnp.pad(b_conv.reshape(1, hidden),
                              ((0, 0), (0, self.Cpad - hidden)))           # [1, Cpad] f32
        self.wh_pad = jnp.pad(w_head, ((0, self.Cpad - hidden),
                                       (0, self.Fpad - self.FEATURE_DIM))
                              ).astype(jnp.bfloat16)                       # [Cpad, Fpad]
        self.bh_pad = jnp.pad(b_head.reshape(1, self.FEATURE_DIM),
                              ((0, 0), (0, self.Fpad - self.FEATURE_DIM))) # [1, Fpad] f32

    def _patches(self, x):
        patches, (To, Ho, Wo) = _im2col_channels_last(x, self.kernel, self.stride)
        B = x.shape[0]
        S = To * Ho * Wo
        tm = min(self.tile_m, _round_up(S, 8))
        S_pad = _round_up(S, tm)
        patches_pad = jnp.pad(
            patches, ((0, 0), (0, S_pad - S), (0, self.Kpad - self.K))
        ).astype(jnp.bfloat16)                                             # [B, S_pad, Kpad]
        return patches_pad, S, tm

    def __call__(self, x, rescale=False, resize=False, return_features=True):
        # rescale=False / resize=False => no preprocessing (matches detector_kwargs).
        assert not rescale and not resize
        patches_pad, S, tm = self._patches(x.astype(jnp.float32))
        feats_pad = conv_pool_head(patches_pad, self.wc_pad, self.bc_pad,
                                   self.wh_pad, self.bh_pad, s_valid=S, tm=tm)
        # return_features=True => pre-softmax 400-dim features.
        return feats_pad[:, :self.FEATURE_DIM]


def _reference(detector, x):
    """Pure-JAX reference (same bf16 quantization points as the kernel path)."""
    patches_pad, S, _ = detector._patches(x.astype(jnp.float32))
    p = patches_pad[:, :S, :].astype(jnp.float32)
    acts = jnp.maximum(
        jnp.einsum("bsk,kc->bsc", p, detector.wc_pad.astype(jnp.float32)) + detector.bc_pad,
        0.0)
    pooled = acts.mean(axis=1).astype(jnp.bfloat16).astype(jnp.float32)
    feats = pooled @ detector.wh_pad.astype(jnp.float32) + detector.bh_pad
    return feats[:, :detector.FEATURE_DIM]


if __name__ == "__main__":
    B, C, T, H, W = 2, 3, 8, 16, 16     # small video batch, NCTHW
    key = jax.random.PRNGKey(0)
    x = jax.random.uniform(key, (B, C, T, H, W), jnp.float32, -1.0, 1.0)

    detector = VideoDetectorPallas(in_channels=C, hidden=32, seed=0)
    feats = detector(x, rescale=False, resize=False, return_features=True)
    feats = jax.block_until_ready(feats)

    ref = _reference(detector, x)
    assert feats.shape == (B, 400), feats.shape
    max_err = float(jnp.max(jnp.abs(feats - ref)))
    assert jnp.allclose(feats, ref, atol=2e-3, rtol=2e-2), f"mismatch vs reference (max |err|={max_err})"
    print("KERNEL_OK")
</pallas_src>

<mosaic_0001>
module attributes {stable_mosaic.version = 11 : i64} {
  func.func @_conv_pool_head_kernel(%arg0: i32, %arg1: i32, %arg2: memref<1x152x128xbf16, #tpu.memory_space<vmem>>, %arg3: memref<128x128xbf16, #tpu.memory_space<vmem>>, %arg4: memref<1x128xf32, #tpu.memory_space<vmem>>, %arg5: memref<128x512xbf16, #tpu.memory_space<vmem>>, %arg6: memref<1x512xf32, #tpu.memory_space<vmem>>, %arg7: memref<1x1x512xf32, #tpu.memory_space<vmem>>, %arg8: memref<1x128xf32, #tpu.memory_space<vmem>>) attributes {dimension_semantics = [#tpu.dimension_semantics<parallel>, #tpu.dimension_semantics<arbitrary>], iteration_bounds = array<i64: 2, 1>, scalar_prefetch = 0 : i64, scratch_operands = 1 : i64, tpu.core_type = #tpu.core_type<tc>, window_params = [{transform_indices = @transform_0, window_bounds = array<i64: 1, 152, 128>}, {pipeline_mode = #tpu.pipeline_mode<synchronous>, transform_indices = @transform_1, window_bounds = array<i64: 128, 128>}, {pipeline_mode = #tpu.pipeline_mode<synchronous>, transform_indices = @transform_2, window_bounds = array<i64: 1, 128>}, {pipeline_mode = #tpu.pipeline_mode<synchronous>, transform_indices = @transform_3, window_bounds = array<i64: 128, 512>}, {pipeline_mode = #tpu.pipeline_mode<synchronous>, transform_indices = @transform_4, window_bounds = array<i64: 1, 512>}, {transform_indices = @transform_5, window_bounds = array<i64: 1, 1, 512>}]} {
    %c0_i32 = arith.constant 0 : i32
    %0 = arith.cmpi eq, %arg1, %c0_i32 : i32
    %1 = arith.extui %0 : i1 to i32
    %c0_i32_0 = arith.constant 0 : i32
    %2 = arith.cmpi ne, %1, %c0_i32_0 : i32
    scf.if %2 {
      %cst_16 = arith.constant 0.000000e+00 : f32
      %30 = vector.broadcast %cst_16 : f32 to vector<1x128xf32>
      %c0_17 = arith.constant 0 : index
      %c0_18 = arith.constant 0 : index
      %31 = vector.load %arg8[%c0_17, %c0_18] : memref<1x128xf32, #tpu.memory_space<vmem>>, vector<1x128xf32>
      tpu.vector_store %arg8[%c0_17, %c0_18], %30 {strides = array<i32>} : memref<1x128xf32, #tpu.memory_space<vmem>>, vector<1x128xf32>,
    } else {
    }
    %c0 = arith.constant 0 : index
    %c0_1 = arith.constant 0 : index
    %c0_2 = arith.constant 0 : index
    %3 = vector.load %arg2[%c0, %c0_1, %c0_2] : memref<1x152x128xbf16, #tpu.memory_space<vmem>>, vector<1x152x128xbf16>
    %4 = vector.shape_cast %3 : vector<1x152x128xbf16> to vector<152x128xbf16>
    %c0_3 = arith.constant 0 : index
    %c0_4 = arith.constant 0 : index
    %5 = vector.load %arg3[%c0_3, %c0_4] : memref<128x128xbf16, #tpu.memory_space<vmem>>, vector<128x128xbf16>
    %cst = arith.constant dense<0.000000e+00> : vector<152x128xf32>
    %6 = tpu.matmul %4, %5, %cst {dimension_numbers = #tpu.dot_dimension_numbers<[1], [0], [0], [1], [0, 0, 1, 1], [], []>} : vector<152x128xbf16>, vector<128x128xbf16>, vector<152x128xf32> -> vector<152x128xf32>
    %c0_5 = arith.constant 0 : index
    %c0_6 = arith.constant 0 : index
    %7 = vector.load %arg4[%c0_5, %c0_6] : memref<1x128xf32, #tpu.memory_space<vmem>>, vector<1x128xf32>
    %8 = vector.broadcast %7 : vector<1x128xf32> to vector<152x128xf32>
    %9 = arith.addf %6, %8 : vector<152x128xf32>
    %cst_7 = arith.constant 0.000000e+00 : f32
    %10 = vector.broadcast %cst_7 : f32 to vector<152x128xf32>
    %11 = arith.maximumf %9, %10 : vector<152x128xf32>
    %c152_i32 = arith.constant 152 : i32
    %12 = arith.muli %arg1, %c152_i32 : i32
    %13 = tpu.iota {dimensions = array<i32: 0>} : vector<152x1xi32>
    %14 = vector.broadcast %12 : i32 to vector<152x1xi32>
    %15 = arith.addi %14, %13 : vector<152x1xi32>
    %c147_i32 = arith.constant 147 : i32
    %16 = vector.broadcast %c147_i32 : i32 to vector<152x1xi32>
    %17 = arith.cmpi slt, %15, %16 : vector<152x1xi32>
    %cst_8 = arith.constant 0.000000e+00 : f32
    %18 = vector.shape_cast %17 : vector<152x1xi1> to vector<152x1xi1>
    %19 = vector.broadcast %18 : vector<152x1xi1> to vector<152x128xi1>
    %20 = vector.broadcast %cst_8 : f32 to vector<152x128xf32>
    %21 = arith.select %19, %11, %20 : vector<152x128xi1>, vector<152x128xf32>
    %c0_9 = arith.constant 0 : index
    %c0_10 = arith.constant 0 : index
    %22 = vector.load %arg8[%c0_9, %c0_10] : memref<1x128xf32, #tpu.memory_space<vmem>>, vector<1x128xf32>
    %cst_11 = arith.constant dense<0.000000e+00> : vector<128xf32>
    %23 = vector.multi_reduction <add>, %21, %cst_11 [0] : vector<152x128xf32> to vector<128xf32>
    %24 = vector.shape_cast %23 : vector<128xf32> to vector<1x128xf32>
    %25 = arith.addf %22, %24 : vector<1x128xf32>
    %c0_12 = arith.constant 0 : index
    %c0_13 = arith.constant 0 : index
    %26 = vector.load %arg8[%c0_12, %c0_13] : memref<1x128xf32, #tpu.memory_space<vmem>>, vector<1x128xf32>
    tpu.vector_store %arg8[%c0_12, %c0_13], %25 {strides = array<i32>} : memref<1x128xf32, #tpu.memory_space<vmem>>, vector<1x128xf32>,
    %c0_i32_14 = arith.constant 0 : i32
    %27 = arith.cmpi eq, %arg1, %c0_i32_14 : i32
    %28 = arith.extui %27 : i1 to i32
    %c0_i32_15 = arith.constant 0 : i32
    %29 = arith.cmpi ne, %28, %c0_i32_15 : i32
    scf.if %29 {
      %c0_16 = arith.constant 0 : index
      %c0_17 = arith.constant 0 : index
      %30 = vector.load %arg8[%c0_16, %c0_17] : memref<1x128xf32, #tpu.memory_space<vmem>>, vector<1x128xf32>
      %cst_18 = arith.constant 0.00680272094 : f32
      %31 = vector.broadcast %cst_18 : f32 to vector<1x128xf32>
      %32 = arith.mulf %30, %31 : vector<1x128xf32>
      %33 = arith.truncf %32 : vector<1x128xf32> to vector<1x128xbf16>
      %c0_19 = arith.constant 0 : index
      %c0_20 = arith.constant 0 : index
      %34 = vector.load %arg5[%c0_19, %c0_20] : memref<128x512xbf16, #tpu.memory_space<vmem>>, vector<128x512xbf16>
      %cst_21 = arith.constant dense<0.000000e+00> : vector<1x512xf32>
      %35 = tpu.matmul %33, %34, %cst_21 {dimension_numbers = #tpu.dot_dimension_numbers<[1], [0], [0], [1], [0, 0, 1, 1], [], []>} : vector<1x128xbf16>, vector<128x512xbf16>, vector<1x512xf32> -> vector<1x512xf32>
      %c0_22 = arith.constant 0 : index
      %c0_23 = arith.constant 0 : index
      %36 = vector.load %arg6[%c0_22, %c0_23] : memref<1x512xf32, #tpu.memory_space<vmem>>, vector<1x512xf32>
      %37 = arith.addf %35, %36 : vector<1x512xf32>
      %c0_24 = arith.constant 0 : index
      %c0_25 = arith.constant 0 : index
      %c0_26 = arith.constant 0 : index
      %38 = vector.load %arg7[%c0_24, %c0_25, %c0_26] : memref<1x1x512xf32, #tpu.memory_space<vmem>>, vector<1x1x512xf32>
      %39 = vector.shape_cast %38 : vector<1x1x512xf32> to vector<1x512xf32>
      %40 = vector.shape_cast %37 : vector<1x512xf32> to vector<1x1x512xf32>
      tpu.vector_store %arg7[%c0_24, %c0_25, %c0_26], %40 {strides = array<i32>} : memref<1x1x512xf32, #tpu.memory_space<vmem>>, vector<1x1x512xf32>,
    } else {
    }
    return
  }
  func.func @transform_0(%arg0: i32, %arg1: i32) -> (i32, i32, i32) {
    %c0_i32 = arith.constant 0 : i32
    %c0_i32_0 = arith.constant 0 : i32
    return %arg0, %arg1, %c0_i32 : i32, i32, i32
  }
  func.func @transform_1(%arg0: i32, %arg1: i32) -> (i32, i32) {
    %c0_i32 = arith.constant 0 : i32
    %c0_i32_0 = arith.constant 0 : i32
    %c0_i32_1 = arith.constant 0 : i32
    return %c0_i32, %c0_i32_0 : i32, i32
  }
  func.func @transform_2(%arg0: i32, %arg1: i32) -> (i32, i32) {
    %c0_i32 = arith.constant 0 : i32
    %c0_i32_0 = arith.constant 0 : i32
    %c0_i32_1 = arith.constant 0 : i32
    return %c0_i32, %c0_i32_0 : i32, i32
  }
  func.func @transform_3(%arg0: i32, %arg1: i32) -> (i32, i32) {
    %c0_i32 = arith.constant 0 : i32
    %c0_i32_0 = arith.constant 0 : i32
    %c0_i32_1 = arith.constant 0 : i32
    return %c0_i32, %c0_i32_0 : i32, i32
  }
  func.func @transform_4(%arg0: i32, %arg1: i32) -> (i32, i32) {
    %c0_i32 = arith.constant 0 : i32
    %c0_i32_0 = arith.constant 0 : i32
    %c0_i32_1 = arith.constant 0 : i32
    return %c0_i32, %c0_i32_0 : i32, i32
  }
  func.func @transform_5(%arg0: i32, %arg1: i32) -> (i32, i32, i32) {
    %c0_i32 = arith.constant 0 : i32
    %c0_i32_0 = arith.constant 0 : i32
    %c0_i32_1 = arith.constant 0 : i32
    return %arg0, %c0_i32, %c0_i32_0 : i32, i32, i32
  }
}

</mosaic_0001>

<llo_original>
// kernel: tpu_custom_call.1
$region0: #{tpu_custom_call.1}
  #allocation0 [shape = 'u32[]', space=smem, size = 0x4, offset = 0x4, fixed_abs, tag = 'smem constant byte address 0x4 - core index']
  #allocation1 [shape = 'u32[144,128]{1,0:T(1,128)}', space=vmem, size = 0x12000, scoped, tag = 'internal scratch']
  #allocation2 [shape = 'f32[1,128]{1,0:T(1,128)}', space=vmem, size = 0x200, scoped, tag = 'scratch operand']
  %s0 = inlined_call_operand.hbm [shape: bf16[2,152,128], index: 0, kind: input, shape index: {}]
  %s1 = inlined_call_operand.hbm [shape: bf16[128,128], index: 1, kind: input, shape index: {}]
  %s2 = inlined_call_operand.vmem [shape: f32[1,128], index: 2, kind: input, shape index: {}]
  %s3 = inlined_call_operand.hbm [shape: bf16[128,512], index: 3, kind: input, shape index: {}]
  %s4 = inlined_call_operand.vmem [shape: f32[1,512], index: 4, kind: input, shape index: {}]
  %s5 = inlined_call_operand.hbm [shape: f32[2,1,512], index: 5, kind: output, shape index: {}]
  %s6 = sld [smem:[#allocation0]]
  $region73: #{tpu_custom_call.1} parent=0
    _
  %s8 = ssub.s32 1, %s6
  %s9 = scalar_select 0, %s8, %s6
  $region1: #{tpu_custom_call.1} parent=0
    #allocation3 [shape = 'u8[77824]{0}', space=vmem, size = 0x13000, scoped, tag = 'input window, operand 0']
    #allocation4 [shape = 's32[2]{0}', space=sflag, size = 0x8, scoped, tag = 'scoped memory for tpu_custom_call.1']
    #allocation5 [shape = 's32[2]{0}', space=sflag, size = 0x8, scoped, tag = 'scoped memory for tpu_custom_call.1']
    #allocation6 [shape = 'u8[32768]{0}', space=vmem, size = 0x8000, scoped, tag = 'input window, operand 1, single buffered']
    #allocation7 [shape = 's32[1]{0}', space=sflag, size = 0x4, scoped, tag = 'scoped memory for tpu_custom_call.1']
    #allocation8 [shape = 'u8[131072]{0}', space=vmem, size = 0x20000, scoped, tag = 'input window, operand 3, single buffered']
    #allocation9 [shape = 'u8[4096]{0}', space=vmem, size = 0x1000, scoped, tag = 'output window, operand 0']
    %10 = vsyncpa [#allocation4], 0
    %s11 = scalar_lea.sflag [#allocation4], 1
    %12 = vsyncpa %s11, 0
    %13 = vsyncpa [#allocation7], 0
    %14 = vsyncpa [#allocation5], 0
    %s15 = scalar_lea.sflag [#allocation5], 1
    %16 = vsyncpa %s15, 0
    loop: start=0, step=1, limit=4
    $region2: #{tpu_custom_call.1} parent=1 // loop_pre_header
      _
    $region3: #{tpu_custom_call.1} parent=1 // loop_header
      %s18 = sphi 0, %s22
      %p19 = scmp.ge.s32.totalorder %s18, 4
      %s25 = sphi 0, %s37
      %s26 = sphi 0, %s33
      %s27 = sphi 0, %s25
      %s28 = sphi 0, %s26
      %s29 = sphi 0, %s27
      %s30 = sphi 0, %s28
      %s42 = sphi 0, %s44
      %s45 = sphi 0, %s42
      %s46 = sphi 0, %s45
      %s62 = sphi 0, %s46
      %s66 = sphi 0, %s66
      %s68 = sphi 0, %s66
      %s69 = sphi 0, %s68
      %s83 = sphi 0, %s69
      %s87 = sphi 0, %s87
      %s89 = sphi 0, %s87
      %s90 = sphi 0, %s89
      %s104 = sphi 0, %s90
      %s108 = sphi 0, %s108
      %s110 = sphi 0, %s108
      %s111 = sphi 0, %s110
      %s125 = sphi 0, %s111
      %s129 = sphi 0, %s129
      %s131 = sphi 0, %s129
      %s132 = sphi 0, %s131
      %s146 = sphi 0, %s132
      %s152 = sphi 0, %s154
      %s155 = sphi 0, %s152
      %s156 = sphi 0, %s155
      %s172 = sphi 0, %s156
    $region4: #{tpu_custom_call.1} parent=1 // loop_header_branch
      %21 = sbr.rel (%p19) target = $region8
    $region5: #{tpu_custom_call.1} parent=1 // loop_body
      %s23 = ssub.s32 %s18, 1
      %s24 = ssub.s32 %s18, 2
      %s31 = sadd.s32 1, %s26
      %p32 = scmp.ge.s32.totalorder %s31, 1
      %s33 = scalar_select %p32, 0, %s31
      %s34 = sadd.s32 1, %s25
      %s35 = scalar_select %p32, %s34, %s25
      %p36 = scmp.ge.s32.totalorder %s35, 2
      %s37 = scalar_select %p36, 0, %s35
      %s38 = ssub.s32 %s25, %s37
      %s39 = ssub.s32 %s26, %s33
      %s40 = sor.u32 %s38, %s39
      %p41 = scmp.eq.s32.totalorder %s40, 0
      %s43 = sadd.s32 %s42, 1
      %s44 = scalar_select %p41, %s42, %s43
      %p47 = pneg %p41
      %p48 = scmp.eq.s32.totalorder %s18, 1
      %p49 = por %p47, %p48
      %p50 = scmp.ne.s32.totalorder %s42, %s45
      %p51 = scmp.eq.s32.totalorder %s18, 0
      %p52 = por %p50, %p51
      %p53 = scmp.ne.s32.totalorder %s42, %s45
      %p54 = scmp.eq.s32.totalorder %s23, 1
      %p55 = por %p53, %p54
      %p56 = scmp.ne.s32.totalorder %s45, %s46
      %p57 = scmp.eq.s32.totalorder %s23, 0
      %p58 = por %p56, %p57
      %p59 = scmp.ne.s32.totalorder %s45, %s46
      %p60 = scmp.eq.s32.totalorder %s24, 1
      %p61 = por %p59, %p60
      %p63 = scmp.ne.s32.totalorder %s46, %s62
      %p64 = scmp.eq.s32.totalorder %s24, 0
      %p65 = por %p63, %p64
      %s67 = sadd.s32 %s66, 1
      %p70 = scmp.eq.s32.totalorder %s18, 1
      %p71 = scmp.ne.s32.totalorder %s66, %s68
      %p72 = scmp.eq.s32.totalorder %s18, 0
      %p73 = por %p71, %p72
      %p74 = scmp.ne.s32.totalorder %s66, %s68
      %p75 = scmp.eq.s32.totalorder %s23, 1
      %p76 = por %p74, %p75
      %p77 = scmp.ne.s32.totalorder %s68, %s69
      %p78 = scmp.eq.s32.totalorder %s23, 0
      %p79 = por %p77, %p78
      %p80 = scmp.ne.s32.totalorder %s68, %s69
      %p81 = scmp.eq.s32.totalorder %s24, 1
      %p82 = por %p80, %p81
      %p84 = scmp.ne.s32.totalorder %s69, %s83
      %p85 = scmp.eq.s32.totalorder %s24, 0
      %p86 = por %p84, %p85
      %s88 = sadd.s32 %s87, 1
      %p91 = scmp.eq.s32.totalorder %s18, 1
      %p92 = scmp.ne.s32.totalorder %s87, %s89
      %p93 = scmp.eq.s32.totalorder %s18, 0
      %p94 = por %p92, %p93
      %p95 = scmp.ne.s32.totalorder %s87, %s89
      %p96 = scmp.eq.s32.totalorder %s23, 1
      %p97 = por %p95, %p96
      %p98 = scmp.ne.s32.totalorder %s89, %s90
      %p99 = scmp.eq.s32.totalorder %s23, 0
      %p100 = por %p98, %p99
      %p101 = scmp.ne.s32.totalorder %s89, %s90
      %p102 = scmp.eq.s32.totalorder %s24, 1
      %p103 = por %p101, %p102
      %p105 = scmp.ne.s32.totalorder %s90, %s104
      %p106 = scmp.eq.s32.totalorder %s24, 0
      %p107 = por %p105, %p106
      %s109 = sadd.s32 %s108, 1
      %p112 = scmp.eq.s32.totalorder %s18, 1
      %p113 = scmp.ne.s32.totalorder %s108, %s110
      %p114 = scmp.eq.s32.totalorder %s18, 0
      %p115 = por %p113, %p114
      %p116 = scmp.ne.s32.totalorder %s108, %s110
      %p117 = scmp.eq.s32.totalorder %s23, 1
      %p118 = por %p116, %p117
      %p119 = scmp.ne.s32.totalorder %s110, %s111
      %p120 = scmp.eq.s32.totalorder %s23, 0
      %p121 = por %p119, %p120
      %p122 = scmp.ne.s32.totalorder %s110, %s111
      %p123 = scmp.eq.s32.totalorder %s24, 1
      %p124 = por %p122, %p123
      %p126 = scmp.ne.s32.totalorder %s111, %s125
      %p127 = scmp.eq.s32.totalorder %s24, 0
      %p128 = por %p126, %p127
      %s130 = sadd.s32 %s129, 1
      %p133 = scmp.eq.s32.totalorder %s18, 1
      %p134 = scmp.ne.s32.totalorder %s129, %s131
      %p135 = scmp.eq.s32.totalorder %s18, 0
      %p136 = por %p134, %p135
      %p137 = scmp.ne.s32.totalorder %s129, %s131
      %p138 = scmp.eq.s32.totalorder %s23, 1
      %p139 = por %p137, %p138
      %p140 = scmp.ne.s32.totalorder %s131, %s132
      %p141 = scmp.eq.s32.totalorder %s23, 0
      %p142 = por %p140, %p141
      %p143 = scmp.ne.s32.totalorder %s131, %s132
      %p144 = scmp.eq.s32.totalorder %s24, 1
      %p145 = por %p143, %p144
      %p147 = scmp.ne.s32.totalorder %s132, %s146
      %p148 = scmp.eq.s32.totalorder %s24, 0
      %p149 = por %p147, %p148
      %s150 = ssub.s32 %s25, %s37
      %p151 = scmp.eq.s32.totalorder %s150, 0
      %s153 = sadd.s32 %s152, 1
      %s154 = scalar_select %p151, %s152, %s153
      %p157 = pneg %p151
      %p158 = scmp.eq.s32.totalorder %s18, 1
      %p159 = por %p157, %p158
      %p160 = scmp.ne.s32.totalorder %s152, %s155
      %p161 = scmp.eq.s32.totalorder %s18, 0
      %p162 = por %p160, %p161
      %p163 = scmp.ne.s32.totalorder %s152, %s155
      %p164 = scmp.eq.s32.totalorder %s23, 1
      %p165 = por %p163, %p164
      %p166 = scmp.ne.s32.totalorder %s155, %s156
      %p167 = scmp.eq.s32.totalorder %s23, 0
      %p168 = por %p166, %p167
      %p169 = scmp.ne.s32.totalorder %s155, %s156
      %p170 = scmp.eq.s32.totalorder %s24, 1
      %p171 = por %p169, %p170
      %p173 = scmp.ne.s32.totalorder %s156, %s172
      %p174 = scmp.eq.s32.totalorder %s24, 0
      %p175 = por %p173, %p174
      %p176 = scmp.le.s32.totalorder 1, %s18
      %p177 = scmp.lt.s32.totalorder %s18, 3
      %p178 = pnand %p176, %p177
      %p179 = pneg %p178
      // Predicated region
      $region9: #{tpu_custom_call.1} parent=5 // pred_check
        _
      $region10: #{tpu_custom_call.1} parent=5 // pred_check_branch
        %181 = sbr.rel (%p178) target = $region12
      $region11: #{tpu_custom_call.1} parent=5 // pred_region
        %s182 = ssub.s32 %s18, 1
        // Predicated region
        $region13: #{tpu_custom_call.1} parent=11 // pred_check
          %p183 = pneg %p79
        $region14: #{tpu_custom_call.1} parent=11 // pred_check_branch
          %185 = sbr.rel (%p183) target = $region16
        $region15: #{tpu_custom_call.1} parent=11 // pred_region
          %s187 = ssub.s32 1024, 1024
          %188 = vsyncadd [#allocation7], %s187
          %s189 = sshll.u32 [#allocation6], 4
          %s190 = int_to_ptr.vmem [resolvable:$true] %s189
          %195 = dma.hbm_to_vmem [thread:$0]  %s1, 1024, %s190, [#allocation7], 64, 64, 4
        $region16: #{tpu_custom_call.1} parent=11 // pred_fallthru
          _
        // Predicated region
        $region17: #{tpu_custom_call.1} parent=11 // pred_check
          %p196 = pneg %p100
        $region18: #{tpu_custom_call.1} parent=11 // pred_check_branch
          %198 = sbr.rel (%p196) target = $region20
        $region19: #{tpu_custom_call.1} parent=11 // pred_region
          _
        $region20: #{tpu_custom_call.1} parent=11 // pred_fallthru
          _
        // Predicated region
        $region21: #{tpu_custom_call.1} parent=11 // pred_check
          %p199 = pneg %p121
        $region22: #{tpu_custom_call.1} parent=11 // pred_check_branch
          %201 = sbr.rel (%p199) target = $region24
        $region23: #{tpu_custom_call.1} parent=11 // pred_region
          %s203 = ssub.s32 4096, 4096
          %204 = vsyncadd [#allocation7], %s203
          %s205 = sshll.u32 [#allocation8], 4
          %s206 = int_to_ptr.vmem [resolvable:$true] %s205
          %211 = dma.hbm_to_vmem [thread:$0]  %s3, 4096, %s206, [#allocation7], 256, 256, 16
        $region24: #{tpu_custom_call.1} parent=11 // pred_fallthru
          _
        // Predicated region
        $region25: #{tpu_custom_call.1} parent=11 // pred_check
          %p212 = pneg %p142
        $region26: #{tpu_custom_call.1} parent=11 // pred_check_branch
          %214 = sbr.rel (%p212) target = $region28
        $region27: #{tpu_custom_call.1} parent=11 // pred_region
          _
        $region28: #{tpu_custom_call.1} parent=11 // pred_fallthru
          _
      $region12: #{tpu_custom_call.1} parent=5 // pred_fallthru
        _
      %p215 = scmp.lt.s32.totalorder %s18, 2
      // Predicated region
      $region29: #{tpu_custom_call.1} parent=5 // pred_check
        %p216 = pneg %p215
      $region30: #{tpu_custom_call.1} parent=5 // pred_check_branch
        %218 = sbr.rel (%p216) target = $region32
      $region31: #{tpu_custom_call.1} parent=5 // pred_region
        // Predicated region
        $region33: #{tpu_custom_call.1} parent=31 // pred_check
          %p219 = pneg %p52
        $region34: #{tpu_custom_call.1} parent=31 // pred_check_branch
          %221 = sbr.rel (%p219) target = $region36
        $region35: #{tpu_custom_call.1} parent=31 // pred_region
          %s222 = sand.u32 %s42, 1
          %s223 = scalar_lea.sflag [#allocation4], %s222
          %s224 = sand.u32 %s42, 1
          %s225 = smul.addr %s224, 76
          %s226 = scalar_lea.vmem [#allocation3], %s225
          %s227 = smul.u32 19, %s26
          %s229 = ssub.s32 1216, 1216
          %230 = vsyncadd %s223, %s229
          %s231 = smul.addr %s25, 19
          %s232 = sadd.s32 %s227, %s231
          %s233 = smul.addr %s232, 64
          %s234 = scalar_lea.hbm %s0, %s233
          %s235 = sshll.u32 %s226, 4
          %s236 = int_to_ptr.vmem [resolvable:$true] %s235
          %241 = dma.hbm_to_vmem [thread:$0]  %s234, 1216, %s236, %s223, 64, 64, 4
        $region36: #{tpu_custom_call.1} parent=31 // pred_fallthru
          _
      $region32: #{tpu_custom_call.1} parent=5 // pred_fallthru
        _
      %p242 = scmp.le.s32.totalorder 1, %s18
      %p243 = scmp.lt.s32.totalorder %s18, 3
      %p244 = pnand %p242, %p243
      %p245 = pneg %p244
      // Predicated region
      $region37: #{tpu_custom_call.1} parent=5 // pred_check
        _
      $region38: #{tpu_custom_call.1} parent=5 // pred_check_branch
        %247 = sbr.rel (%p244) target = $region40
      $region39: #{tpu_custom_call.1} parent=5 // pred_region
        %s248 = ssub.s32 %s18, 1
        %s249 = sand.u32 %s45, 1
        %s250 = scalar_lea.sflag [#allocation4], %s249
        %s251 = sand.u32 %s45, 1
        %s252 = smul.addr %s251, 76
        %s253 = scalar_lea.vmem [#allocation3], %s252
        // Predicated region
        $region41: #{tpu_custom_call.1} parent=39 // pred_check
          %p254 = pneg %p58
        $region42: #{tpu_custom_call.1} parent=39 // pred_check_branch
          %256 = sbr.rel (%p254) target = $region44
        $region43: #{tpu_custom_call.1} parent=39 // pred_region
          %257 = dma.done %s250, 1216
        $region44: #{tpu_custom_call.1} parent=39 // pred_fallthru
          _
        // Predicated region
        $region45: #{tpu_custom_call.1} parent=39 // pred_check
          %p258 = pneg %p79
        $region46: #{tpu_custom_call.1} parent=39 // pred_check_branch
          %260 = sbr.rel (%p258) target = $region48
        $region47: #{tpu_custom_call.1} parent=39 // pred_region
          %261 = dma.done [#allocation7], 1024
        $region48: #{tpu_custom_call.1} parent=39 // pred_fallthru
          _
        // Predicated region
        $region49: #{tpu_custom_call.1} parent=39 // pred_check
          %p262 = pneg %p121
        $region50: #{tpu_custom_call.1} parent=39 // pred_check_branch
          %264 = sbr.rel (%p262) target = $region52
        $region51: #{tpu_custom_call.1} parent=39 // pred_region
          %265 = dma.done [#allocation7], 4096
        $region52: #{tpu_custom_call.1} parent=39 // pred_fallthru
          _
        %s266 = sand.u32 %s45, 1
        %s267 = scalar_lea.sflag [#allocation4], %s266
        %s268 = sand.u32 %s45, 1
        %s269 = smul.addr %s268, 76
        %s270 = scalar_lea.vmem [#allocation3], %s269
        %p271 = pneg %p58
        %p272 = pneg %p55
        %p273 = pneg %p79
        %p274 = pneg %p76
        %p275 = pneg %p100
        %p276 = pneg %p97
        %p277 = pneg %p121
        %p278 = pneg %p118
        %p279 = pneg %p142
        %p280 = pneg %p139
        %p281 = pneg %p168
        %p282 = pneg %p165
        %s283 = sand.u32 %s155, 1
        %s284 = scalar_lea.sflag [#allocation5], %s283
        %s285 = sand.u32 %s155, 1
        %s286 = smul.addr %s285, 4
        %s287 = scalar_lea.vmem [#allocation9], %s286
        %s288 = smul.u32 19, %s28
        %p290 = scmp.eq.s32.totalorder %s28, 0
        // Predicated region
        $region53: #{tpu_custom_call.1} parent=39 // pred_check
          %p291 = pneg %p290
        $region54: #{tpu_custom_call.1} parent=39 // pred_check_branch
          %293 = sbr.rel (%p291) target = $region56
        $region55: #{tpu_custom_call.1} parent=39 // pred_region
          %294 = vst [vmem:[#allocation2] sm:$0x1] 0.0
        $region56: #{tpu_custom_call.1} parent=39 // pred_fallthru
          _
        %v295 = vld [vmem:[%s253] sm:$0xf]
        %v296 = vld [vmem:[%s253 + $0x4] sm:$0xf]
        %v297 = vld [vmem:[%s253 + $0x8] sm:$0xf]
        %v298 = vld [vmem:[%s253 + $0xc] sm:$0xf]
        %v299 = vld [vmem:[%s253 + $0x10] sm:$0xf]
        %v300 = vld [vmem:[%s253 + $0x14] sm:$0xf]
        %v301 = vld [vmem:[%s253 + $0x18] sm:$0xf]
        %v302 = vld [vmem:[%s253 + $0x1c] sm:$0xf]
        %v303 = vld [vmem:[%s253 + $0x20] sm:$0xf]
        %v304 = vld [vmem:[%s253 + $0x24] sm:$0xf]
        %v305 = vld [vmem:[%s253 + $0x28] sm:$0xf]
        %v306 = vld [vmem:[%s253 + $0x2c] sm:$0xf]
        %v307 = vld [vmem:[%s253 + $0x30] sm:$0xf]
        %v308 = vld [vmem:[%s253 + $0x34] sm:$0xf]
        %v309 = vld [vmem:[%s253 + $0x38] sm:$0xf]
        %v310 = vld [vmem:[%s253 + $0x3c] sm:$0xf]
        %v311 = vld [vmem:[%s253 + $0x40] sm:$0xf]
        %v312 = vld [vmem:[%s253 + $0x44] sm:$0xf]
        %v313 = vld [vmem:[%s253 + $0x48] sm:$0xf]
        %v314 = vld [vmem:[#allocation6] sm:$0xf]
        %v315 = vld [vmem:[#allocation6 + $0x4] sm:$0xf]
        %v316 = vld [vmem:[#allocation6 + $0x8] sm:$0xf]
        %v317 = vld [vmem:[#allocation6 + $0xc] sm:$0xf]
        %v318 = vld [vmem:[#allocation6 + $0x10] sm:$0xf]
        %v319 = vld [vmem:[#allocation6 + $0x14] sm:$0xf]
        %v320 = vld [vmem:[#allocation6 + $0x18] sm:$0xf]
        %v321 = vld [vmem:[#allocation6 + $0x1c] sm:$0xf]
        %v322 = vld [vmem:[#allocation6 + $0x20] sm:$0xf]
        %v323 = vld [vmem:[#allocation6 + $0x24] sm:$0xf]
        %v324 = vld [vmem:[#allocation6 + $0x28] sm:$0xf]
        %v325 = vld [vmem:[#allocation6 + $0x2c] sm:$0xf]
        %v326 = vld [vmem:[#allocation6 + $0x30] sm:$0xf]
        %v327 = vld [vmem:[#allocation6 + $0x34] sm:$0xf]
        %v328 = vld [vmem:[#allocation6 + $0x38] sm:$0xf]
        %v329 = vld [vmem:[#allocation6 + $0x3c] sm:$0xf]
        %v330 = vld [vmem:[%s2] sm:$0x1]
        %v332 = vlaneseq
        %v333 = vshrl.u32 %v332, 7
        %v334 = vsub.s32 0, %v333
        %v335 = vrot.slane %v330, %v334
        %v356 = vunpack.c.l.b16 %v295
        %v357 = vunpack.c.l.b16 %v296
        %v358 = vunpack.c.l.b16 %v297
        %v359 = vunpack.c.l.b16 %v298
        %v360 = vunpack.c.l.b16 %v299
        %v361 = vunpack.c.l.b16 %v300
        %v362 = vunpack.c.l.b16 %v301
        %v363 = vunpack.c.l.b16 %v302
        %v364 = vunpack.c.l.b16 %v303
        %v365 = vunpack.c.l.b16 %v304
        %v366 = vunpack.c.l.b16 %v305
        %v367 = vunpack.c.l.b16 %v306
        %v368 = vunpack.c.l.b16 %v307
        %v369 = vunpack.c.l.b16 %v308
        %v370 = vunpack.c.l.b16 %v309
        %v371 = vunpack.c.l.b16 %v310
        %v372 = vunpack.c.l.b16 %v311
        %v373 = vunpack.c.l.b16 %v312
        %v374 = vunpack.c.l.b16 %v313
        %v375 = vpack.c.b16 %v357, %v356
        %v376 = vpack.c.b16 %v359, %v358
        %v377 = vpack.c.b16 %v361, %v360
        %v378 = vpack.c.b16 %v363, %v362
        %v379 = vpack.c.b16 %v365, %v364
        %v380 = vpack.c.b16 %v367, %v366
        %v381 = vpack.c.b16 %v369, %v368
        %v382 = vpack.c.b16 %v371, %v370
        %v383 = vpack.c.b16 %v373, %v372
        %v384 = vpack.c.b16 %v374, %v374
        %v411 = vunpack.c.l.b16 %v314
        %v412 = vunpack.c.l.b16 %v315
        %v413 = vunpack.c.l.b16 %v316
        %v414 = vunpack.c.l.b16 %v317
        %v415 = vunpack.c.l.b16 %v318
        %v416 = vunpack.c.l.b16 %v319
        %v417 = vunpack.c.l.b16 %v320
        %v418 = vunpack.c.l.b16 %v321
        %v419 = vunpack.c.l.b16 %v322
        %v420 = vunpack.c.l.b16 %v323
        %v421 = vunpack.c.l.b16 %v324
        %v422 = vunpack.c.l.b16 %v325
        %v423 = vunpack.c.l.b16 %v326
        %v424 = vunpack.c.l.b16 %v327
        %v425 = vunpack.c.l.b16 %v328
        %v426 = vunpack.c.l.b16 %v329
        %v427 = vpack.c.b16 %v412, %v411
        %v428 = vpack.c.b16 %v414, %v413
        %v429 = vpack.c.b16 %v416, %v415
        %v430 = vpack.c.b16 %v418, %v417
        %v431 = vpack.c.b16 %v420, %v419
        %v432 = vpack.c.b16 %v422, %v421
        %v433 = vpack.c.b16 %v424, %v423
        %v434 = vpack.c.b16 %v426, %v425
        %443 = vmatprep.subr.bf16.mxu0 0
        %444 = vmatpush1.bf16.msra.mxu0 %v427
        %445 = vmatprep.subr.bf16.mxu0 0
        %446 = vmatpush1.bf16.msra.mxu0 %v428
        %447 = vmatprep.subr.bf16.mxu0 0
        %448 = vmatpush1.bf16.msra.mxu0 %v429
        %449 = vmatprep.subr.bf16.mxu0 0
        %450 = vmatpush1.bf16.msra.mxu0 %v430
        %451 = vmatprep.subr.bf16.mxu0 0
        %452 = vmatpush1.bf16.msra.mxu0 %v431
        %453 = vmatprep.subr.bf16.mxu0 0
        %454 = vmatpush1.bf16.msra.mxu0 %v432
        %455 = vmatprep.subr.bf16.mxu0 0
        %456 = vmatpush1.bf16.msra.mxu0 %v433
        %457 = vmatprep.subr.bf16.mxu0 0
        %458 = vmatpush1.bf16.msra.mxu0 %v434
        %459 = vmatprep.subr.bf16.mxu0 0
        %460 = vmatpush1.bf16.msra.mxu0 0
        %461 = vmatprep.subr.bf16.mxu0 0
        %462 = vmatpush1.bf16.msra.mxu0 0
        %463 = vmatprep.subr.bf16.mxu0 0
        %464 = vmatpush1.bf16.msra.mxu0 0
        %465 = vmatprep.subr.bf16.mxu0 0
        %466 = vmatpush1.bf16.msra.mxu0 0
        %467 = vmatprep.subr.bf16.mxu0 0
        %468 = vmatpush1.bf16.msra.mxu0 0
        %469 = vmatprep.subr.bf16.mxu0 0
        %470 = vmatpush1.bf16.msra.mxu0 0
        %471 = vmatprep.subr.bf16.mxu0 0
        %472 = vmatpush1.bf16.msra.mxu0 0
        %473 = vmatprep.subr.bf16.mxu0 0
        %474 = vmatpush1.bf16.msra.mxu0 0
        %475 = vmatprep.mubr.bf16.mxu0 0
        %476 = vmatmul.mubr.bf16.gmra.mrb[0].mxu0 %v375
        %v477 = vpop.f32.mrb[0].mxu0
        %v478 = vadd.f32 %v335, %v477
        %v479 = vpop.f32.mrb[0].mxu0
        %v480 = vpop.f32.mrb[0].mxu0
        %v481 = vadd.f32 %v335, %v480
        %v482 = vpop.f32.mrb[0].mxu0
        %483 = vmatprep.mubr.bf16.mxu0 0
        %484 = vmatmul.mubr.bf16.gmra.mrb[0].mxu0 %v376
        %v485 = vpop.f32.mrb[0].mxu0
        %v486 = vadd.f32 %v335, %v485
        %v487 = vpop.f32.mrb[0].mxu0
        %v488 = vpop.f32.mrb[0].mxu0
        %v489 = vadd.f32 %v335, %v488
        %v490 = vpop.f32.mrb[0].mxu0
        %491 = vmatprep.mubr.bf16.mxu0 0
        %492 = vmatmul.mubr.bf16.gmra.mrb[0].mxu0 %v377
        %v493 = vpop.f32.mrb[0].mxu0
        %v494 = vadd.f32 %v335, %v493
        %v495 = vpop.f32.mrb[0].mxu0
        %v496 = vpop.f32.mrb[0].mxu0
        %v497 = vadd.f32 %v335, %v496
        %v498 = vpop.f32.mrb[0].mxu0
        %499 = vmatprep.mubr.bf16.mxu0 0
        %500 = vmatmul.mubr.bf16.gmra.mrb[0].mxu0 %v378
        %v501 = vpop.f32.mrb[0].mxu0
        %v502 = vadd.f32 %v335, %v501
        %v503 = vpop.f32.mrb[0].mxu0
        %v504 = vpop.f32.mrb[0].mxu0
        %v505 = vadd.f32 %v335, %v504
        %v506 = vpop.f32.mrb[0].mxu0
        %507 = vmatprep.mubr.bf16.mxu0 0
        %508 = vmatmul.mubr.bf16.gmra.mrb[0].mxu0 %v379
        %v509 = vpop.f32.mrb[0].mxu0
        %v510 = vadd.f32 %v335, %v509
        %v511 = vpop.f32.mrb[0].mxu0
        %v512 = vpop.f32.mrb[0].mxu0
        %v513 = vadd.f32 %v335, %v512
        %v514 = vpop.f32.mrb[0].mxu0
        %515 = vmatprep.mubr.bf16.mxu0 0
        %516 = vmatmul.mubr.bf16.gmra.mrb[0].mxu0 %v380
        %v517 = vpop.f32.mrb[0].mxu0
        %v518 = vadd.f32 %v335, %v517
        %v519 = vpop.f32.mrb[0].mxu0
        %v520 = vpop.f32.mrb[0].mxu0
        %v521 = vadd.f32 %v335, %v520
        %v522 = vpop.f32.mrb[0].mxu0
        %523 = vmatprep.mubr.bf16.mxu0 0
        %524 = vmatmul.mubr.bf16.gmra.mrb[0].mxu0 %v381
        %v525 = vpop.f32.mrb[0].mxu0
        %v526 = vadd.f32 %v335, %v525
        %v527 = vpop.f32.mrb[0].mxu0
        %v528 = vpop.f32.mrb[0].mxu0
        %v529 = vadd.f32 %v335, %v528
        %v530 = vpop.f32.mrb[0].mxu0
        %531 = vmatprep.mubr.bf16.mxu0 0
        %532 = vmatmul.mubr.bf16.gmra.mrb[0].mxu0 %v382
        %v533 = vpop.f32.mrb[0].mxu0
        %v534 = vadd.f32 %v335, %v533
        %v535 = vpop.f32.mrb[0].mxu0
        %v536 = vpop.f32.mrb[0].mxu0
        %v537 = vadd.f32 %v335, %v536
        %v538 = vpop.f32.mrb[0].mxu0
        %539 = vmatprep.mubr.bf16.mxu0 0
        %540 = vmatmul.mubr.bf16.gmra.mrb[0].mxu0 %v383
        %v541 = vpop.f32.mrb[0].mxu0
        %v542 = vadd.f32 %v335, %v541
        %v543 = vpop.f32.mrb[0].mxu0
        %v544 = vpop.f32.mrb[0].mxu0
        %v545 = vadd.f32 %v335, %v544
        %v546 = vpop.f32.mrb[0].mxu0
        %547 = vmatprep.mubr.bf16.mxu0 0
        %548 = vmatmul.mubr.bf16.gmra.mrb[0].mxu0 %v384
        %v549 = vpop.f32.mrb[0].mxu0
        %v550 = vadd.f32 %v335, %v549
        %v551 = vpop.f32.mrb[0].mxu0
        %v552 = vpop.f32.mrb[0].mxu0
        %v553 = vpop.f32.mrb[0].mxu0
        %554 = vdwg.mxu0
        %v555 = vmax.f32 %v478, 0.0
        %v556 = vmax.f32 %v481, 0.0
        %v557 = vmax.f32 %v486, 0.0
        %v558 = vmax.f32 %v489, 0.0
        %v559 = vmax.f32 %v494, 0.0
        %v560 = vmax.f32 %v497, 0.0
        %v561 = vmax.f32 %v502, 0.0
        %v562 = vmax.f32 %v505, 0.0
        %v563 = vmax.f32 %v510, 0.0
        %v564 = vmax.f32 %v513, 0.0
        %v565 = vmax.f32 %v518, 0.0
        %v566 = vmax.f32 %v521, 0.0
        %v567 = vmax.f32 %v526, 0.0
        %v568 = vmax.f32 %v529, 0.0
        %v569 = vmax.f32 %v534, 0.0
        %v570 = vmax.f32 %v537, 0.0
        %v571 = vmax.f32 %v542, 0.0
        %v572 = vmax.f32 %v545, 0.0
        %v573 = vmax.f32 %v550, 0.0
        %s574 = smul.u32 %s28, 152
        %v575 = vlaneseq
        %v576 = vshrl.u32 %v575, 7
        %v577 = vadd.s32 %v576, 8
        %v578 = vadd.s32 %v576, 16
        %v579 = vadd.s32 %v576, 24
        %v580 = vadd.s32 %v576, 32
        %v581 = vadd.s32 %v576, 40
        %v582 = vadd.s32 %v576, 48
        %v583 = vadd.s32 %v576, 56
        %v584 = vadd.s32 %v576, 64
        %v585 = vadd.s32 %v576, 72
        %v586 = vadd.s32 %v576, 80
        %v587 = vadd.s32 %v576, 88
        %v588 = vadd.s32 %v576, 96
        %v589 = vadd.s32 %v576, 104
        %v590 = vadd.s32 %v576, 112
        %v591 = vadd.s32 %v576, 120
        %v592 = vadd.s32 %v576, 128
        %v593 = vadd.s32 %v576, 136
        %v594 = vadd.s32 %v576, 144
        %v595 = vstv %s574
        %v596 = vadd.s32 %v595, %v576
        %v597 = vadd.s32 %v595, %v577
        %v598 = vadd.s32 %v595, %v578
        %v599 = vadd.s32 %v595, %v579
        %v600 = vadd.s32 %v595, %v580
        %v601 = vadd.s32 %v595, %v581
        %v602 = vadd.s32 %v595, %v582
        %v603 = vadd.s32 %v595, %v583
        %v604 = vadd.s32 %v595, %v584
        %v605 = vadd.s32 %v595, %v585
        %v606 = vadd.s32 %v595, %v586
        %v607 = vadd.s32 %v595, %v587
        %v608 = vadd.s32 %v595, %v588
        %v609 = vadd.s32 %v595, %v589
        %v610 = vadd.s32 %v595, %v590
        %v611 = vadd.s32 %v595, %v591
        %v612 = vadd.s32 %v595, %v592
        %v613 = vadd.s32 %v595, %v593
        %v614 = vadd.s32 %v595, %v594
        %vm615 = vcmp.lt.s32.totalorder %v596, 147
        %vm616 = vcmp.lt.s32.totalorder %v597, 147
        %vm617 = vcmp.lt.s32.totalorder %v598, 147
        %vm618 = vcmp.lt.s32.totalorder %v599, 147
        %vm619 = vcmp.lt.s32.totalorder %v600, 147
        %vm620 = vcmp.lt.s32.totalorder %v601, 147
        %vm621 = vcmp.lt.s32.totalorder %v602, 147
        %vm622 = vcmp.lt.s32.totalorder %v603, 147
        %vm623 = vcmp.lt.s32.totalorder %v604, 147
        %vm624 = vcmp.lt.s32.totalorder %v605, 147
        %vm625 = vcmp.lt.s32.totalorder %v606, 147
        %vm626 = vcmp.lt.s32.totalorder %v607, 147
        %vm627 = vcmp.lt.s32.totalorder %v608, 147
        %vm628 = vcmp.lt.s32.totalorder %v609, 147
        %vm629 = vcmp.lt.s32.totalorder %v610, 147
        %vm630 = vcmp.lt.s32.totalorder %v611, 147
        %vm631 = vcmp.lt.s32.totalorder %v612, 147
        %vm632 = vcmp.lt.s32.totalorder %v613, 147
        %vm633 = vcmp.lt.s32.totalorder %v614, 147
        %v634 = vsel %vm615, 1, 0
        %v635 = vsel %vm616, 1, 0
        %v636 = vsel %vm617, 1, 0
        %v637 = vsel %vm618, 1, 0
        %v638 = vsel %vm619, 1, 0
        %v639 = vsel %vm620, 1, 0
        %v640 = vsel %vm621, 1, 0
        %v641 = vsel %vm622, 1, 0
        %v642 = vsel %vm623, 1, 0
        %v643 = vsel %vm624, 1, 0
        %v644 = vsel %vm625, 1, 0
        %v645 = vsel %vm626, 1, 0
        %v646 = vsel %vm627, 1, 0
        %v647 = vsel %vm628, 1, 0
        %v648 = vsel %vm629, 1, 0
        %v649 = vsel %vm630, 1, 0
        %v650 = vsel %vm631, 1, 0
        %v651 = vsel %vm632, 1, 0
        %v652 = vsel %vm633, 1, 0
        %vm653 = vcmp.eq.s32.totalorder %v634, 1
        %vm654 = vcmp.eq.s32.totalorder %v635, 1
        %vm655 = vcmp.eq.s32.totalorder %v636, 1
        %vm656 = vcmp.eq.s32.totalorder %v637, 1
        %vm657 = vcmp.eq.s32.totalorder %v638, 1
        %vm658 = vcmp.eq.s32.totalorder %v639, 1
        %vm659 = vcmp.eq.s32.totalorder %v640, 1
        %vm660 = vcmp.eq.s32.totalorder %v641, 1
        %vm661 = vcmp.eq.s32.totalorder %v642, 1
        %vm662 = vcmp.eq.s32.totalorder %v643, 1
        %vm663 = vcmp.eq.s32.totalorder %v644, 1
        %vm664 = vcmp.eq.s32.totalorder %v645, 1
        %vm665 = vcmp.eq.s32.totalorder %v646, 1
        %vm666 = vcmp.eq.s32.totalorder %v647, 1
        %vm667 = vcmp.eq.s32.totalorder %v648, 1
        %vm668 = vcmp.eq.s32.totalorder %v649, 1
        %vm669 = vcmp.eq.s32.totalorder %v650, 1
        %vm670 = vcmp.eq.s32.totalorder %v651, 1
        %vm671 = vcmp.eq.s32.totalorder %v652, 1
        %v672 = vsel %vm653, %v555, 0.0
        %v673 = vsel %vm654, %v556, 0.0
        %v674 = vsel %vm655, %v557, 0.0
        %v675 = vsel %vm656, %v558, 0.0
        %v676 = vsel %vm657, %v559, 0.0
        %v677 = vsel %vm658, %v560, 0.0
        %v678 = vsel %vm659, %v561, 0.0
        %v679 = vsel %vm660, %v562, 0.0
        %v680 = vsel %vm661, %v563, 0.0
        %v681 = vsel %vm662, %v564, 0.0
        %v682 = vsel %vm663, %v565, 0.0
        %v683 = vsel %vm664, %v566, 0.0
        %v684 = vsel %vm665, %v567, 0.0
        %v685 = vsel %vm666, %v568, 0.0
        %v686 = vsel %vm667, %v569, 0.0
        %v687 = vsel %vm668, %v570, 0.0
        %v688 = vsel %vm669, %v571, 0.0
        %v689 = vsel %vm670, %v572, 0.0
        %v690 = vsel %vm671, %v573, 0.0
        %v691 = vld [vmem:[#allocation2] sm:$0x1]
        %v692 = vadd.f32 %v672, %v673
        %v693 = vadd.f32 %v692, %v674
        %v694 = vadd.f32 %v693, %v675
        %v695 = vadd.f32 %v694, %v676
        %v696 = vadd.f32 %v695, %v677
        %v697 = vadd.f32 %v696, %v678
        %v698 = vadd.f32 %v697, %v679
        %v699 = vadd.f32 %v698, %v680
        %v700 = vadd.f32 %v699, %v681
        %v701 = vadd.f32 %v700, %v682
        %v702 = vadd.f32 %v701, %v683
        %v703 = vadd.f32 %v702, %v684
        %v704 = vadd.f32 %v703, %v685
        %v705 = vadd.f32 %v704, %v686
        %v706 = vadd.f32 %v705, %v687
        %v707 = vadd.f32 %v706, %v688
        %v708 = vadd.f32 %v707, %v689
        %v709 = vadd.f32 %v708, %v690
        %v710 = vrot.slane %v709, 4
        %v711 = vadd.f32 %v709, %v710
        %v712 = vrot.slane %v711, 2
        %v713 = vadd.f32 %v711, %v712
        %v714 = vrot.slane %v713, 1
        %v715 = vadd.f32 %v713, %v714
        %v716 = vadd.f32 %v691, %v715
        %717 = vst [vmem:[#allocation2] sm:$0x1] %v716
        // Predicated region
        $region57: #{tpu_custom_call.1} parent=39 // pred_check
          %p718 = pneg %p290
        $region58: #{tpu_custom_call.1} parent=39 // pred_check_branch
          %720 = sbr.rel (%p718) target = $region60
        $region59: #{tpu_custom_call.1} parent=39 // pred_region
          %v721 = vld [vmem:[#allocation2] sm:$0x1]
          %v722 = vmul.f32 %v721, 0.006802721
          %v723 = vpack.c.bf16 %v722, %v722
          %v724 = vld [vmem:[#allocation8] sm:$0xff]
          %v725 = vld [vmem:[#allocation8 + $0x8] sm:$0xff]
          %v726 = vld [vmem:[#allocation8 + $0x10] sm:$0xff]
          %v727 = vld [vmem:[#allocation8 + $0x18] sm:$0xff]
          %v728 = vld [vmem:[#allocation8 + $0x20] sm:$0xff]
          %v729 = vld [vmem:[#allocation8 + $0x28] sm:$0xff]
          %v730 = vld [vmem:[#allocation8 + $0x30] sm:$0xff]
          %v731 = vld [vmem:[#allocation8 + $0x38] sm:$0xff]
          %v732 = vld [vmem:[#allocation8 + $0x40] sm:$0xff]
          %v733 = vld [vmem:[#allocation8 + $0x48] sm:$0xff]
          %v734 = vld [vmem:[#allocation8 + $0x50] sm:$0xff]
          %v735 = vld [vmem:[#allocation8 + $0x58] sm:$0xff]
          %v736 = vld [vmem:[#allocation8 + $0x60] sm:$0xff]
          %v737 = vld [vmem:[#allocation8 + $0x68] sm:$0xff]
          %v738 = vld [vmem:[#allocation8 + $0x70] sm:$0xff]
          %v739 = vld [vmem:[#allocation8 + $0x78] sm:$0xff]
          %v740 = vld [vmem:[#allocation8 + $0x80] sm:$0xff]
          %v741 = vld [vmem:[#allocation8 + $0x88] sm:$0xff]
          %v742 = vld [vmem:[#allocation8 + $0x90] sm:$0xff]
          %v743 = vld [vmem:[#allocation8 + $0x98] sm:$0xff]
          %v744 = vld [vmem:[#allocation8 + $0xa0] sm:$0xff]
          %v745 = vld [vmem:[#allocation8 + $0xa8] sm:$0xff]
          %v746 = vld [vmem:[#allocation8 + $0xb0] sm:$0xff]
          %v747 = vld [vmem:[#allocation8 + $0xb8] sm:$0xff]
          %v748 = vld [vmem:[#allocation8 + $0xc0] sm:$0xff]
          %v749 = vld [vmem:[#allocation8 + $0xc8] sm:$0xff]
          %v750 = vld [vmem:[#allocation8 + $0xd0] sm:$0xff]
          %v751 = vld [vmem:[#allocation8 + $0xd8] sm:$0xff]
          %v752 = vld [vmem:[#allocation8 + $0xe0] sm:$0xff]
          %v753 = vld [vmem:[#allocation8 + $0xe8] sm:$0xff]
          %v754 = vld [vmem:[#allocation8 + $0xf0] sm:$0xff]
          %v755 = vld [vmem:[#allocation8 + $0xf8] sm:$0xff]
          %v756 = vld [vmem:[%s4] sm:$0xf]
          %v789 = vunpack.c.l.b16 %v724
          %v790 = vunpack.c.h.b16 %v724
          %v791 = vunpack.c.l.b16 %v725
          %v792 = vunpack.c.h.b16 %v725
          %v793 = vunpack.c.l.b16 %v726
          %v794 = vunpack.c.h.b16 %v726
          %v795 = vunpack.c.l.b16 %v727
          %v796 = vunpack.c.h.b16 %v727
          %v797 = vunpack.c.l.b16 %v728
          %v798 = vunpack.c.h.b16 %v728
          %v799 = vunpack.c.l.b16 %v729
          %v800 = vunpack.c.h.b16 %v729
          %v801 = vunpack.c.l.b16 %v730
          %v802 = vunpack.c.h.b16 %v730
          %v803 = vunpack.c.l.b16 %v731
          %v804 = vunpack.c.h.b16 %v731
          %v805 = vunpack.c.l.b16 %v732
          %v806 = vunpack.c.h.b16 %v732
          %v807 = vunpack.c.l.b16 %v733
          %v808 = vunpack.c.h.b16 %v733
          %v809 = vunpack.c.l.b16 %v734
          %v810 = vunpack.c.h.b16 %v734
          %v811 = vunpack.c.l.b16 %v735
          %v812 = vunpack.c.h.b16 %v735
          %v813 = vunpack.c.l.b16 %v736
          %v814 = vunpack.c.h.b16 %v736
          %v815 = vunpack.c.l.b16 %v737
          %v816 = vunpack.c.h.b16 %v737
          %v817 = vunpack.c.l.b16 %v738
          %v818 = vunpack.c.h.b16 %v738
          %v819 = vunpack.c.l.b16 %v739
          %v820 = vunpack.c.h.b16 %v739
          %v821 = vunpack.c.l.b16 %v740
          %v822 = vunpack.c.h.b16 %v740
          %v823 = vunpack.c.l.b16 %v741
          %v824 = vunpack.c.h.b16 %v741
          %v825 = vunpack.c.l.b16 %v742
          %v826 = vunpack.c.h.b16 %v742
          %v827 = vunpack.c.l.b16 %v743
          %v828 = vunpack.c.h.b16 %v743
          %v829 = vunpack.c.l.b16 %v744
          %v830 = vunpack.c.h.b16 %v744
          %v831 = vunpack.c.l.b16 %v745
          %v832 = vunpack.c.h.b16 %v745
          %v833 = vunpack.c.l.b16 %v746
          %v834 = vunpack.c.h.b16 %v746
          %v835 = vunpack.c.l.b16 %v747
          %v836 = vunpack.c.h.b16 %v747
          %v837 = vunpack.c.l.b16 %v748
          %v838 = vunpack.c.h.b16 %v748
          %v839 = vunpack.c.l.b16 %v749
          %v840 = vunpack.c.h.b16 %v749
          %v841 = vunpack.c.l.b16 %v750
          %v842 = vunpack.c.h.b16 %v750
          %v843 = vunpack.c.l.b16 %v751
          %v844 = vunpack.c.h.b16 %v751
          %v845 = vunpack.c.l.b16 %v752
          %v846 = vunpack.c.h.b16 %v752
          %v847 = vunpack.c.l.b16 %v753
          %v848 = vunpack.c.h.b16 %v753
          %v849 = vunpack.c.l.b16 %v754
          %v850 = vunpack.c.h.b16 %v754
          %v851 = vunpack.c.l.b16 %v755
          %v852 = vunpack.c.h.b16 %v755
          %v853 = vpack.c.b16 %v793, %v789
          %v854 = vpack.c.b16 %v794, %v790
          %v855 = vpack.c.b16 %v795, %v791
          %v856 = vpack.c.b16 %v796, %v792
          %v857 = vpack.c.b16 %v801, %v797
          %v858 = vpack.c.b16 %v802, %v798
          %v859 = vpack.c.b16 %v803, %v799
          %v860 = vpack.c.b16 %v804, %v800
          %v861 = vpack.c.b16 %v809, %v805
          %v862 = vpack.c.b16 %v810, %v806
          %v863 = vpack.c.b16 %v811, %v807
          %v864 = vpack.c.b16 %v812, %v808
          %v865 = vpack.c.b16 %v817, %v813
          %v866 = vpack.c.b16 %v818, %v814
          %v867 = vpack.c.b16 %v819, %v815
          %v868 = vpack.c.b16 %v820, %v816
          %v869 = vpack.c.b16 %v825, %v821
          %v870 = vpack.c.b16 %v826, %v822
          %v871 = vpack.c.b16 %v827, %v823
          %v872 = vpack.c.b16 %v828, %v824
          %v873 = vpack.c.b16 %v833, %v829
          %v874 = vpack.c.b16 %v834, %v830
          %v875 = vpack.c.b16 %v835, %v831
          %v876 = vpack.c.b16 %v836, %v832
          %v877 = vpack.c.b16 %v841, %v837
          %v878 = vpack.c.b16 %v842, %v838
          %v879 = vpack.c.b16 %v843, %v839
          %v880 = vpack.c.b16 %v844, %v840
          %v881 = vpack.c.b16 %v849, %v845
          %v882 = vpack.c.b16 %v850, %v846
          %v883 = vpack.c.b16 %v851, %v847
          %v884 = vpack.c.b16 %v852, %v848
          %v918 = vlaneseq
          %v919 = vshrl.u32 %v918, 7
          %v920 = vsub.s32 0, %v919
          %v921 = vrot.slane %v756, %v920
          %v922 = vlaneseq
          %v923 = vshrl.u32 %v922, 7
          %v924 = vsub.s32 1, %v923
          %v925 = vrot.slane %v756, %v924
          %v926 = vlaneseq
          %v927 = vshrl.u32 %v926, 7
          %v928 = vsub.s32 2, %v927
          %v929 = vrot.slane %v756, %v928
          %v930 = vlaneseq
          %v931 = vshrl.u32 %v930, 7
          %v932 = vsub.s32 3, %v931
          %v933 = vrot.slane %v756, %v932
          %938 = vmatprep.subr.bf16.mxu0 %v854
          %939 = vmatpush1.bf16.msra.mxu0 %v853
          %940 = vmatprep.subr.bf16.mxu0 %v858
          %941 = vmatpush1.bf16.msra.mxu0 %v857
          %942 = vmatprep.subr.bf16.mxu0 %v862
          %943 = vmatpush1.bf16.msra.mxu0 %v861
          %944 = vmatprep.subr.bf16.mxu0 %v866
          %945 = vmatpush1.bf16.msra.mxu0 %v865
          %946 = vmatprep.subr.bf16.mxu0 %v870
          %947 = vmatpush1.bf16.msra.mxu0 %v869
          %948 = vmatprep.subr.bf16.mxu0 %v874
          %949 = vmatpush1.bf16.msra.mxu0 %v873
          %950 = vmatprep.subr.bf16.mxu0 %v878
          %951 = vmatpush1.bf16.msra.mxu0 %v877
          %952 = vmatprep.subr.bf16.mxu0 %v882
          %953 = vmatpush1.bf16.msra.mxu0 %v881
          %954 = vmatprep.subr.bf16.mxu0 0
          %955 = vmatpush1.bf16.msra.mxu0 0
          %956 = vmatprep.subr.bf16.mxu0 0
          %957 = vmatpush1.bf16.msra.mxu0 0
          %958 = vmatprep.subr.bf16.mxu0 0
          %959 = vmatpush1.bf16.msra.mxu0 0
          %960 = vmatprep.subr.bf16.mxu0 0
          %961 = vmatpush1.bf16.msra.mxu0 0
          %962 = vmatprep.subr.bf16.mxu0 0
          %963 = vmatpush1.bf16.msra.mxu0 0
          %964 = vmatprep.subr.bf16.mxu0 0
          %965 = vmatpush1.bf16.msra.mxu0 0
          %966 = vmatprep.subr.bf16.mxu0 0
          %967 = vmatpush1.bf16.msra.mxu0 0
          %968 = vmatprep.subr.bf16.mxu0 0
          %969 = vmatpush1.bf16.msra.mxu0 0
          %970 = vmatprep.mubr.bf16.mxu0 0
          %971 = vmatmul.mubr.bf16.gmra.mrb[0].mxu0 %v723
          %v972 = vpop.f32.mrb[0].mxu0
          %v973 = vadd.f32 %v921, %v972
          %v974 = vpop.f32.mrb[0].mxu0
          %v975 = vadd.f32 %v925, %v974
          %v976 = vpop.f32.mrb[0].mxu0
          %v977 = vpop.f32.mrb[0].mxu0
          %978 = vdwg.mxu0
          %979 = vmatprep.subr.bf16.mxu0 %v856
          %980 = vmatpush1.bf16.msra.mxu0 %v855
          %981 = vmatprep.subr.bf16.mxu0 %v860
          %982 = vmatpush1.bf16.msra.mxu0 %v859
          %983 = vmatprep.subr.bf16.mxu0 %v864
          %984 = vmatpush1.bf16.msra.mxu0 %v863
          %985 = vmatprep.subr.bf16.mxu0 %v868
          %986 = vmatpush1.bf16.msra.mxu0 %v867
          %987 = vmatprep.subr.bf16.mxu0 %v872
          %988 = vmatpush1.bf16.msra.mxu0 %v871
          %989 = vmatprep.subr.bf16.mxu0 %v876
          %990 = vmatpush1.bf16.msra.mxu0 %v875
          %991 = vmatprep.subr.bf16.mxu0 %v880
          %992 = vmatpush1.bf16.msra.mxu0 %v879
          %993 = vmatprep.subr.bf16.mxu0 %v884
          %994 = vmatpush1.bf16.msra.mxu0 %v883
          %995 = vmatprep.subr.bf16.mxu0 0
          %996 = vmatpush1.bf16.msra.mxu0 0
          %997 = vmatprep.subr.bf16.mxu0 0
          %998 = vmatpush1.bf16.msra.mxu0 0
          %999 = vmatprep.subr.bf16.mxu0 0
          %1000 = vmatpush1.bf16.msra.mxu0 0
          %1001 = vmatprep.subr.bf16.mxu0 0
          %1002 = vmatpush1.bf16.msra.mxu0 0
          %1003 = vmatprep.subr.bf16.mxu0 0
          %1004 = vmatpush1.bf16.msra.mxu0 0
          %1005 = vmatprep.subr.bf16.mxu0 0
          %1006 = vmatpush1.bf16.msra.mxu0 0
          %1007 = vmatprep.subr.bf16.mxu0 0
          %1008 = vmatpush1.bf16.msra.mxu0 0
          %1009 = vmatprep.subr.bf16.mxu0 0
          %1010 = vmatpush1.bf16.msra.mxu0 0
          %1011 = vmatprep.mubr.bf16.mxu0 0
          %1012 = vmatmul.mubr.bf16.gmra.mrb[0].mxu0 %v723
          %v1013 = vpop.f32.mrb[0].mxu0
          %v1014 = vadd.f32 %v929, %v1013
          %v1015 = vpop.f32.mrb[0].mxu0
          %v1016 = vadd.f32 %v933, %v1015
          %v1017 = vpop.f32.mrb[0].mxu0
          %v1018 = vpop.f32.mrb[0].mxu0
          %1019 = vdwg.mxu0
          %v1024 = vcombine.low %v973, %v975
          %v1025 = vcombine.low %v1014, %v1016
          %v1027 = vunpack.c.l.s4 1966171168
          %v1028 = vunpack.c.0.s8 %v1027
          %v1029 = vlaneseq
          %v1030 = vshrl.u32 %v1029, 7
          %v1031 = vsub.s32 %v1028, %v1030
          %v1032 = vrot.slane %v1024, %v1031
          %v1034 = vunpack.c.l.s4 1966171168
          %v1035 = vunpack.c.0.s8 %v1034
          %v1036 = vlaneseq
          %v1037 = vshrl.u32 %v1036, 7
          %v1038 = vsub.s32 %v1035, %v1037
          %v1039 = vrot.slane %v1025, %v1038
          %v1040 = vcombine.low %v1032, %v1039
          %v1042 = vunpack.c.l.s4 1966171168
          %v1043 = vunpack.c.0.s8 %v1042
          %v1044 = vlaneseq
          %v1045 = vshrl.u32 %v1044, 7
          %v1046 = vsub.s32 %v1043, %v1045
          %v1047 = vrot.slane %v1040, %v1046
          %v1049 = vlaneseq
          %vm1050 = vcmp.ge.s32.totalorder %v1049, 0
          %vm1051 = vcmp.lt.s32.totalorder %v1049, 512
          %vm1052 = vmand %vm1050, %vm1051
          %1053 = vst.msk [vmem:[%s287] sm:$0xf] %vm1052, %v1047
        $region60: #{tpu_custom_call.1} parent=39 // pred_fallthru
          _
        %s1054 = sand.u32 %s155, 1
        %s1055 = scalar_lea.sflag [#allocation5], %s1054
        %s1056 = sand.u32 %s155, 1
        %s1057 = smul.addr %s1056, 4
        %s1058 = scalar_lea.vmem [#allocation9], %s1057
        // Predicated region
        $region61: #{tpu_custom_call.1} parent=39 // pred_check
          %p1059 = pneg %p165
        $region62: #{tpu_custom_call.1} parent=39 // pred_check_branch
          %1061 = sbr.rel (%p1059) target = $region64
        $region63: #{tpu_custom_call.1} parent=39 // pred_region
          %s1063 = ssub.s32 64, 64
          %1064 = vsyncadd %s1055, %s1063
          %s1065 = smul.addr %s27, 4
          %s1066 = smul.addr %s1065, 16
          %s1067 = scalar_lea.hbm %s5, %s1066
          %s1069 = sshll.u32 %s1058, 4
          %s1070 = int_to_ptr.vmem [resolvable:$true] %s1069
          %1072 = dma.vmem_to_hbm [thread:$0]  %s1070, 64, %s1067, %s1055
        $region64: #{tpu_custom_call.1} parent=39 // pred_fallthru
          _
      $region40: #{tpu_custom_call.1} parent=5 // pred_fallthru
        _
      %p1073 = scmp.le.s32.totalorder 2, %s18
      // Predicated region
      $region65: #{tpu_custom_call.1} parent=5 // pred_check
        %p1074 = pneg %p1073
      $region66: #{tpu_custom_call.1} parent=5 // pred_check_branch
        %1076 = sbr.rel (%p1074) target = $region68
      $region67: #{tpu_custom_call.1} parent=5 // pred_region
        %s1077 = ssub.s32 %s18, 2
        // Predicated region
        $region69: #{tpu_custom_call.1} parent=67 // pred_check
          %p1078 = pneg %p171
        $region70: #{tpu_custom_call.1} parent=67 // pred_check_branch
          %1080 = sbr.rel (%p1078) target = $region72
        $region71: #{tpu_custom_call.1} parent=67 // pred_region
          %s1081 = sand.u32 %s156, 1
          %s1082 = scalar_lea.sflag [#allocation5], %s1081
          %s1083 = sand.u32 %s156, 1
          %s1084 = smul.addr %s1083, 4
          %s1085 = scalar_lea.vmem [#allocation9], %s1084
          %1086 = dma.done %s1082, 64
        $region72: #{tpu_custom_call.1} parent=67 // pred_fallthru
          _
      $region68: #{tpu_custom_call.1} parent=5 // pred_fallthru
        _
    $region6: #{tpu_custom_call.1} parent=1 // loop_footer
      %s22 = sadd.s32 1, %s18
    $region7: #{tpu_custom_call.1} parent=1 // loop_footer_branch
      %17 = sbr.rel target = $region3
    $region8: #{tpu_custom_call.1} parent=1 // loop_exit
      _
    %1087 = vsyncpa [#allocation4], 1
    %s1088 = scalar_lea.sflag [#allocation4], 1
    %1089 = vsyncpa %s1088, 1
    %1090 = vsyncpa [#allocation7], 1
    %1091 = vsyncpa [#allocation5], 1
    %s1092 = scalar_lea.sflag [#allocation5], 1
    %1093 = vsyncpa %s1092, 1

</llo_original>
